<compile_context>
chip_gen: v7x
topology: tpu7x:2x2x1
jax: 0.10.0
libtpu: 0.0.40
codegen_flags: <defaults>
</compile_context>

<pallas_src>
import functools
import math

import jax
import jax.numpy as jnp
from jax import lax
from jax.experimental import pallas as pl
from jax.experimental.pallas import tpu as pltpu


def _elu(x):
    # ELU(alpha=1).  min() keeps exp() from overflowing on the unselected
    # branch.  (expm1 would be marginally more accurate for tiny |x| but the
    # exp-1 form is guaranteed to lower in Mosaic and is well within tol.)
    return jnp.where(x > 0, x, jnp.exp(jnp.minimum(x, 0.0)) - 1.0)


def _fire_kernel(x_ref, w1_ref, b1_ref, we_ref, be_ref, o_ref, t_ref,
                 *, H, W, HWp, Cs, Bn):
    """One batch block of Bn images.

    x_ref : (Bn, Cin, HWp)          f32
    w1_ref: (Cs, Cin)               bf16
    b1_ref: (Cs, 1)                 f32
    we_ref: (2*Ce, 9*Cs)            bf16   fused [W2 @ centre tap ; W3 flat]
    be_ref: (2*Ce, 1)               f32    stacked [b2 ; b3]
    o_ref : (Bn, 2*Ce, HWp)
    t_ref : (9*Cs, HWp)             bf16   VMEM scratch (tap matrix)
    """
    # ---- hoisted boundary predicates (shared by all taps & all images) -----
    r = lax.broadcasted_iota(jnp.int32, (1, HWp), 1)          # flattened index
    ww = r % W                                                # col; don't-care in pad
    always = r >= 0
    row_ok = (r >= W, always, r < (H - 1) * W)                # kh = 0,1,2 (dh=-1,0,+1)
    col_ok = (ww >= 1, always, ww <= W - 2)                   # kw = 0,1,2 (dw=-1,0,+1)

    w1 = w1_ref[...]                                          # bf16
    b1 = b1_ref[...]                                          # f32
    we = we_ref[...]                                          # bf16
    be = be_ref[...]                                          # f32

    for b in range(Bn):                                       # static unroll
        # ---- squeeze 1x1 conv + ELU ----------------------------------------
        x = x_ref[b].astype(jnp.bfloat16)                     # (Cin, HWp)
        s = jnp.dot(w1, x, preferred_element_type=jnp.float32)
        s = _elu(s + b1)                                      # (Cs, HWp) f32

        # ---- build tap matrix T in VMEM: row slab k*Cs holds tap (dh,dw) ----
        # Flattened index r = h*W + w; tap (dh,dw) is s shifted by dh*W + dw
        # along the lane axis, with out-of-range rows/cols masked to zero
        # (this also kills roll wrap-around and any HW->HWp padding garbage).
        for k in range(9):
            kh, kw = k // 3, k % 3
            off = (kh - 1) * W + (kw - 1)
            tap = pltpu.roll(s, shift=(-off) % HWp, axis=1) if off != 0 else s
            valid = row_ok[kh] & col_ok[kw]                   # (1, HWp)
            t_ref[k * Cs:(k + 1) * Cs, :] = (
                jnp.where(valid, tap, 0.0).astype(jnp.bfloat16))

        # ---- both expand branches + concat in ONE (2Ce,9Cs)@(9Cs,HWp) matmul
        o = jnp.dot(we, t_ref[...], preferred_element_type=jnp.float32)
        o_ref[b] = _elu(o + be).astype(o_ref.dtype)           # full-tile store


def _pick_block_n(n):
    """Images per grid step: amortize per-step overhead while keeping >= 2
    grid steps so both v7x TensorCores get work."""
    for bn in (8, 4, 2):
        if n % bn == 0 and n // bn >= 2:
            return bn
    return 1


@jax.jit
def fire_forward(x, w1, b1, w2, b2, w3, b3):
    """x: (N, Cin, H, W) NCHW.  Weights in PyTorch OIHW layout:
    w1:(Cs,Cin,1,1) b1:(Cs,)  w2:(Ce,Cs,1,1) b2:(Ce,)  w3:(Ce,Cs,3,3) b3:(Ce,)
    Returns (N, 2*Ce, H, W)."""
    N, Cin, H, W = x.shape
    Cs = w1.shape[0]
    Ce = w2.shape[0]
    HW = H * W
    HWp = max(128, ((HW + 127) // 128) * 128)     # lane-dense stores
    Bn = _pick_block_n(N)

    # Metadata-only reshape of x (pad HW only if needed).
    x_flat = x.reshape(N, Cin, HW)
    if HWp != HW:
        x_flat = jnp.pad(x_flat, ((0, 0), (0, 0), (0, HWp - HW)))

    # MXU operands in bf16 (accumulation stays f32 inside the kernel).
    w1m = w1.reshape(Cs, Cin).astype(jnp.bfloat16)
    b1m = b1.reshape(Cs, 1).astype(jnp.float32)

    # Fused expand weight: rows 0:Ce = W2 in the centre-tap column slab,
    # rows Ce:2Ce = W3 flattened tap-major (tap k cols k*Cs:(k+1)*Cs).
    w3_flat = jnp.transpose(w3, (0, 2, 3, 1)).reshape(Ce, 9 * Cs)
    we = jnp.zeros((2 * Ce, 9 * Cs), jnp.float32)
    we = we.at[0:Ce, 4 * Cs:5 * Cs].set(w2.reshape(Ce, Cs))
    we = we.at[Ce:2 * Ce, :].set(w3_flat)
    wem = we.astype(jnp.bfloat16)
    bem = jnp.concatenate([b2, b3]).reshape(2 * Ce, 1).astype(jnp.float32)

    kernel = functools.partial(_fire_kernel, H=H, W=W, HWp=HWp, Cs=Cs, Bn=Bn)
    out_flat = pl.pallas_call(
        kernel,
        out_shape=jax.ShapeDtypeStruct((N, 2 * Ce, HWp), x.dtype),
        grid=(N // Bn,),
        in_specs=[
            pl.BlockSpec((Bn, Cin, HWp), lambda i: (i, 0, 0)),   # x
            pl.BlockSpec((Cs, Cin), lambda i: (0, 0)),           # w1
            pl.BlockSpec((Cs, 1), lambda i: (0, 0)),             # b1
            pl.BlockSpec((2 * Ce, 9 * Cs), lambda i: (0, 0)),    # fused expand W
            pl.BlockSpec((2 * Ce, 1), lambda i: (0, 0)),         # fused expand b
        ],
        out_specs=pl.BlockSpec((Bn, 2 * Ce, HWp), lambda i: (i, 0, 0)),
        scratch_shapes=[pltpu.VMEM((9 * Cs, HWp), jnp.bfloat16)],
        compiler_params=pltpu.CompilerParams(
            dimension_semantics=("parallel",)),
    )(x_flat, w1m, b1m, wem, bem)

    return out_flat[:, :, :HW].reshape(N, 2 * Ce, H, W)


def _reference(x, w1, b1, w2, b2, w3, b3):
    """Pure-JAX (XLA conv, f32 HIGHEST precision) reference of Fire forward."""
    dn = ("NCHW", "OIHW", "NCHW")

    def conv(inp, w, b, pad):
        y = lax.conv_general_dilated(inp, w, window_strides=(1, 1),
                                     padding=pad, dimension_numbers=dn,
                                     precision=lax.Precision.HIGHEST)
        return y + b[None, :, None, None]

    s = _elu(conv(x, w1, b1, "VALID"))
    o1 = conv(s, w2, b2, "VALID")
    o2 = conv(s, w3, b3, ((1, 1), (1, 1)))
    return _elu(jnp.concatenate([o1, o2], axis=1))


if __name__ == "__main__":
    key = jax.random.PRNGKey(0)
    ks = jax.random.split(key, 7)

    N, Cin, H, W = 2, 32, 16, 16
    Cs, Ce = 16, 64            # squeeze_planes, expand_planes -> out C = 128

    x = jax.random.normal(ks[0], (N, Cin, H, W), jnp.float32)
    # PyTorch init: weight ~ N(0, sqrt(2 / (k*k*in_channels)))
    w1 = jax.random.normal(ks[1], (Cs, Cin, 1, 1), jnp.float32) * math.sqrt(2.0 / (1 * 1 * Cin))
    b1 = jax.random.normal(ks[2], (Cs,), jnp.float32) * 0.1
    w2 = jax.random.normal(ks[3], (Ce, Cs, 1, 1), jnp.float32) * math.sqrt(2.0 / (1 * 1 * Cs))
    b2 = jax.random.normal(ks[4], (Ce,), jnp.float32) * 0.1
    w3 = jax.random.normal(ks[5], (Ce, Cs, 3, 3), jnp.float32) * math.sqrt(2.0 / (3 * 3 * Cs))
    b3 = jax.random.normal(ks[6], (Ce,), jnp.float32) * 0.1

    out = fire_forward(x, w1, b1, w2, b2, w3, b3)
    out = jax.block_until_ready(out)

    ref = _reference(x, w1, b1, w2, b2, w3, b3)
    assert out.shape == (N, 2 * Ce, H, W), out.shape
    # Tolerance accounts for bf16 MXU operands (f32 accumulation) vs f32 ref.
    max_err = float(jnp.max(jnp.abs(out - ref)))
    assert max_err < 6e-2, f"max abs err {max_err}"

    print("KERNEL_OK")
</pallas_src>

<mosaic_0001>
module attributes {stable_mosaic.version = 11 : i64} {
  func.func @_fire_kernel(%arg0: i32, %arg1: memref<1x32x256xf32, #tpu.memory_space<vmem>>, %arg2: memref<16x32xbf16, #tpu.memory_space<vmem>>, %arg3: memref<16x1xf32, #tpu.memory_space<vmem>>, %arg4: memref<128x144xbf16, #tpu.memory_space<vmem>>, %arg5: memref<128x1xf32, #tpu.memory_space<vmem>>, %arg6: memref<1x128x256xf32, #tpu.memory_space<vmem>>, %arg7: memref<144x256xbf16, #tpu.memory_space<vmem>>) attributes {dimension_semantics = [#tpu.dimension_semantics<parallel>], iteration_bounds = array<i64: 2>, scalar_prefetch = 0 : i64, scratch_operands = 1 : i64, tpu.core_type = #tpu.core_type<tc>, window_params = [{transform_indices = @transform_0, window_bounds = array<i64: 1, 32, 256>}, {pipeline_mode = #tpu.pipeline_mode<synchronous>, transform_indices = @transform_1, window_bounds = array<i64: 16, 32>}, {pipeline_mode = #tpu.pipeline_mode<synchronous>, transform_indices = @transform_2, window_bounds = array<i64: 16, 1>}, {pipeline_mode = #tpu.pipeline_mode<synchronous>, transform_indices = @transform_3, window_bounds = array<i64: 128, 144>}, {pipeline_mode = #tpu.pipeline_mode<synchronous>, transform_indices = @transform_4, window_bounds = array<i64: 128, 1>}, {transform_indices = @transform_5, window_bounds = array<i64: 1, 128, 256>}]} {
    %0 = tpu.iota {dimensions = array<i32: 1>} : vector<1x256xi32>
    %c16_i32 = arith.constant 16 : i32
    %c0_i32 = arith.constant 0 : i32
    %1 = arith.cmpi eq, %c16_i32, %c0_i32 : i32
    %c1_i32 = arith.constant 1 : i32
    %2 = arith.select %1, %c1_i32, %c16_i32 : i32
    %3 = vector.broadcast %2 : i32 to vector<1x256xi32>
    %4 = arith.remsi %0, %3 : vector<1x256xi32>
    %c0_i32_0 = arith.constant 0 : i32
    %5 = vector.broadcast %c0_i32_0 : i32 to vector<1x256xi32>
    %6 = arith.cmpi ne, %4, %5 : vector<1x256xi32>
    %c0_i32_1 = arith.constant 0 : i32
    %7 = vector.broadcast %c0_i32_1 : i32 to vector<1x256xi32>
    %8 = arith.cmpi slt, %4, %7 : vector<1x256xi32>
    %c0_i32_2 = arith.constant 0 : i32
    %9 = arith.cmpi slt, %2, %c0_i32_2 : i32
    %10 = vector.broadcast %9 : i1 to vector<1x256xi1>
    %11 = vector.broadcast %10 : vector<1x256xi1> to vector<1x256xi1>
    %12 = arith.xori %8, %11 : vector<1x256xi1>
    %13 = arith.andi %12, %6 : vector<1x256xi1>
    %14 = vector.broadcast %2 : i32 to vector<1x256xi32>
    %15 = arith.addi %4, %14 : vector<1x256xi32>
    %16 = arith.select %13, %15, %4 : vector<1x256xi1>, vector<1x256xi32>
    %c0_i32_3 = arith.constant 0 : i32
    %17 = vector.broadcast %c0_i32_3 : i32 to vector<1x256xi32>
    %18 = arith.cmpi sge, %0, %17 : vector<1x256xi32>
    %c16_i32_4 = arith.constant 16 : i32
    %19 = vector.broadcast %c16_i32_4 : i32 to vector<1x256xi32>
    %20 = arith.cmpi sge, %0, %19 : vector<1x256xi32>
    %c240_i32 = arith.constant 240 : i32
    %21 = vector.broadcast %c240_i32 : i32 to vector<1x256xi32>
    %22 = arith.cmpi slt, %0, %21 : vector<1x256xi32>
    %c1_i32_5 = arith.constant 1 : i32
    %23 = vector.broadcast %c1_i32_5 : i32 to vector<1x256xi32>
    %24 = arith.cmpi sge, %16, %23 : vector<1x256xi32>
    %c14_i32 = arith.constant 14 : i32
    %25 = vector.broadcast %c14_i32 : i32 to vector<1x256xi32>
    %26 = arith.cmpi sle, %16, %25 : vector<1x256xi32>
    %c0 = arith.constant 0 : index
    %c0_6 = arith.constant 0 : index
    %27 = vector.load %arg2[%c0, %c0_6] : memref<16x32xbf16, #tpu.memory_space<vmem>>, vector<16x32xbf16>
    %c0_7 = arith.constant 0 : index
    %c0_8 = arith.constant 0 : index
    %28 = vector.load %arg3[%c0_7, %c0_8] : memref<16x1xf32, #tpu.memory_space<vmem>>, vector<16x1xf32>
    %c0_9 = arith.constant 0 : index
    %c0_10 = arith.constant 0 : index
    %29 = vector.load %arg4[%c0_9, %c0_10] : memref<128x144xbf16, #tpu.memory_space<vmem>>, vector<128x144xbf16>
    %c0_11 = arith.constant 0 : index
    %c0_12 = arith.constant 0 : index
    %30 = vector.load %arg5[%c0_11, %c0_12] : memref<128x1xf32, #tpu.memory_space<vmem>>, vector<128x1xf32>
    %c0_13 = arith.constant 0 : index
    %c0_14 = arith.constant 0 : index
    %c0_15 = arith.constant 0 : index
    %31 = vector.load %arg1[%c0_13, %c0_14, %c0_15] : memref<1x32x256xf32, #tpu.memory_space<vmem>>, vector<1x32x256xf32>
    %32 = vector.shape_cast %31 : vector<1x32x256xf32> to vector<32x256xf32>
    %33 = arith.truncf %32 : vector<32x256xf32> to vector<32x256xbf16>
    %cst = arith.constant dense<0.000000e+00> : vector<16x256xf32>
    %34 = tpu.matmul %27, %33, %cst {dimension_numbers = #tpu.dot_dimension_numbers<[1], [0], [0], [1], [0, 0, 1, 1], [], []>} : vector<16x32xbf16>, vector<32x256xbf16>, vector<16x256xf32> -> vector<16x256xf32>
    %35 = vector.broadcast %28 : vector<16x1xf32> to vector<16x256xf32>
    %36 = arith.addf %34, %35 : vector<16x256xf32>
    %cst_16 = arith.constant 0.000000e+00 : f32
    %37 = vector.broadcast %cst_16 : f32 to vector<16x256xf32>
    %38 = arith.cmpf ogt, %36, %37 : vector<16x256xf32>
    %cst_17 = arith.constant 0.000000e+00 : f32
    %39 = vector.broadcast %cst_17 : f32 to vector<16x256xf32>
    %40 = arith.minimumf %36, %39 : vector<16x256xf32>
    %41 = math.exp %40 : vector<16x256xf32>
    %cst_18 = arith.constant 1.000000e+00 : f32
    %42 = vector.broadcast %cst_18 : f32 to vector<16x256xf32>
    %43 = arith.subf %41, %42 : vector<16x256xf32>
    %44 = arith.select %38, %36, %43 : vector<16x256xi1>, vector<16x256xf32>
    %c17_i32 = arith.constant 17 : i32
    %45 = tpu.dynamic_rotate %44 by %c17_i32 dim 1 : vector<16x256xf32>, i32 -> vector<16x256xf32>
    %46 = arith.andi %20, %24 : vector<1x256xi1>
    %cst_19 = arith.constant 0.000000e+00 : f32
    %47 = vector.shape_cast %46 : vector<1x256xi1> to vector<1x256xi1>
    %48 = vector.broadcast %47 : vector<1x256xi1> to vector<16x256xi1>
    %49 = vector.broadcast %cst_19 : f32 to vector<16x256xf32>
    %50 = arith.select %48, %45, %49 : vector<16x256xi1>, vector<16x256xf32>
    %51 = arith.truncf %50 : vector<16x256xf32> to vector<16x256xbf16>
    %c0_20 = arith.constant 0 : index
    %c0_21 = arith.constant 0 : index
    %52 = vector.load %arg7[%c0_20, %c0_21] : memref<144x256xbf16, #tpu.memory_space<vmem>>, vector<16x256xbf16>
    tpu.vector_store %arg7[%c0_20, %c0_21], %51 {strides = array<i32>} : memref<144x256xbf16, #tpu.memory_space<vmem>>, vector<16x256xbf16>,
    %c16_i32_22 = arith.constant 16 : i32
    %53 = tpu.dynamic_rotate %44 by %c16_i32_22 dim 1 : vector<16x256xf32>, i32 -> vector<16x256xf32>
    %54 = arith.andi %20, %18 : vector<1x256xi1>
    %cst_23 = arith.constant 0.000000e+00 : f32
    %55 = vector.shape_cast %54 : vector<1x256xi1> to vector<1x256xi1>
    %56 = vector.broadcast %55 : vector<1x256xi1> to vector<16x256xi1>
    %57 = vector.broadcast %cst_23 : f32 to vector<16x256xf32>
    %58 = arith.select %56, %53, %57 : vector<16x256xi1>, vector<16x256xf32>
    %59 = arith.truncf %58 : vector<16x256xf32> to vector<16x256xbf16>
    %c16 = arith.constant 16 : index
    %c0_24 = arith.constant 0 : index
    %60 = vector.load %arg7[%c16, %c0_24] : memref<144x256xbf16, #tpu.memory_space<vmem>>, vector<16x256xbf16>
    tpu.vector_store %arg7[%c16, %c0_24], %59 {strides = array<i32>} : memref<144x256xbf16, #tpu.memory_space<vmem>>, vector<16x256xbf16>,
    %c15_i32 = arith.constant 15 : i32
    %61 = tpu.dynamic_rotate %44 by %c15_i32 dim 1 : vector<16x256xf32>, i32 -> vector<16x256xf32>
    %62 = arith.andi %20, %26 : vector<1x256xi1>
    %cst_25 = arith.constant 0.000000e+00 : f32
    %63 = vector.shape_cast %62 : vector<1x256xi1> to vector<1x256xi1>
    %64 = vector.broadcast %63 : vector<1x256xi1> to vector<16x256xi1>
    %65 = vector.broadcast %cst_25 : f32 to vector<16x256xf32>
    %66 = arith.select %64, %61, %65 : vector<16x256xi1>, vector<16x256xf32>
    %67 = arith.truncf %66 : vector<16x256xf32> to vector<16x256xbf16>
    %c32 = arith.constant 32 : index
    %c0_26 = arith.constant 0 : index
    %68 = vector.load %arg7[%c32, %c0_26] : memref<144x256xbf16, #tpu.memory_space<vmem>>, vector<16x256xbf16>
    tpu.vector_store %arg7[%c32, %c0_26], %67 {strides = array<i32>} : memref<144x256xbf16, #tpu.memory_space<vmem>>, vector<16x256xbf16>,
    %c1_i32_27 = arith.constant 1 : i32
    %69 = tpu.dynamic_rotate %44 by %c1_i32_27 dim 1 : vector<16x256xf32>, i32 -> vector<16x256xf32>
    %70 = arith.andi %18, %24 : vector<1x256xi1>
    %cst_28 = arith.constant 0.000000e+00 : f32
    %71 = vector.shape_cast %70 : vector<1x256xi1> to vector<1x256xi1>
    %72 = vector.broadcast %71 : vector<1x256xi1> to vector<16x256xi1>
    %73 = vector.broadcast %cst_28 : f32 to vector<16x256xf32>
    %74 = arith.select %72, %69, %73 : vector<16x256xi1>, vector<16x256xf32>
    %75 = arith.truncf %74 : vector<16x256xf32> to vector<16x256xbf16>
    %c48 = arith.constant 48 : index
    %c0_29 = arith.constant 0 : index
    %76 = vector.load %arg7[%c48, %c0_29] : memref<144x256xbf16, #tpu.memory_space<vmem>>, vector<16x256xbf16>
    tpu.vector_store %arg7[%c48, %c0_29], %75 {strides = array<i32>} : memref<144x256xbf16, #tpu.memory_space<vmem>>, vector<16x256xbf16>,
    %77 = arith.andi %18, %18 : vector<1x256xi1>
    %cst_30 = arith.constant 0.000000e+00 : f32
    %78 = vector.shape_cast %77 : vector<1x256xi1> to vector<1x256xi1>
    %79 = vector.broadcast %78 : vector<1x256xi1> to vector<16x256xi1>
    %80 = vector.broadcast %cst_30 : f32 to vector<16x256xf32>
    %81 = arith.select %79, %44, %80 : vector<16x256xi1>, vector<16x256xf32>
    %82 = arith.truncf %81 : vector<16x256xf32> to vector<16x256xbf16>
    %c64 = arith.constant 64 : index
    %c0_31 = arith.constant 0 : index
    %83 = vector.load %arg7[%c64, %c0_31] : memref<144x256xbf16, #tpu.memory_space<vmem>>, vector<16x256xbf16>
    tpu.vector_store %arg7[%c64, %c0_31], %82 {strides = array<i32>} : memref<144x256xbf16, #tpu.memory_space<vmem>>, vector<16x256xbf16>,
    %c255_i32 = arith.constant 255 : i32
    %84 = tpu.dynamic_rotate %44 by %c255_i32 dim 1 : vector<16x256xf32>, i32 -> vector<16x256xf32>
    %85 = arith.andi %18, %26 : vector<1x256xi1>
    %cst_32 = arith.constant 0.000000e+00 : f32
    %86 = vector.shape_cast %85 : vector<1x256xi1> to vector<1x256xi1>
    %87 = vector.broadcast %86 : vector<1x256xi1> to vector<16x256xi1>
    %88 = vector.broadcast %cst_32 : f32 to vector<16x256xf32>
    %89 = arith.select %87, %84, %88 : vector<16x256xi1>, vector<16x256xf32>
    %90 = arith.truncf %89 : vector<16x256xf32> to vector<16x256xbf16>
    %c80 = arith.constant 80 : index
    %c0_33 = arith.constant 0 : index
    %91 = vector.load %arg7[%c80, %c0_33] : memref<144x256xbf16, #tpu.memory_space<vmem>>, vector<16x256xbf16>
    tpu.vector_store %arg7[%c80, %c0_33], %90 {strides = array<i32>} : memref<144x256xbf16, #tpu.memory_space<vmem>>, vector<16x256xbf16>,
    %c241_i32 = arith.constant 241 : i32
    %92 = tpu.dynamic_rotate %44 by %c241_i32 dim 1 : vector<16x256xf32>, i32 -> vector<16x256xf32>
    %93 = arith.andi %22, %24 : vector<1x256xi1>
    %cst_34 = arith.constant 0.000000e+00 : f32
    %94 = vector.shape_cast %93 : vector<1x256xi1> to vector<1x256xi1>
    %95 = vector.broadcast %94 : vector<1x256xi1> to vector<16x256xi1>
    %96 = vector.broadcast %cst_34 : f32 to vector<16x256xf32>
    %97 = arith.select %95, %92, %96 : vector<16x256xi1>, vector<16x256xf32>
    %98 = arith.truncf %97 : vector<16x256xf32> to vector<16x256xbf16>
    %c96 = arith.constant 96 : index
    %c0_35 = arith.constant 0 : index
    %99 = vector.load %arg7[%c96, %c0_35] : memref<144x256xbf16, #tpu.memory_space<vmem>>, vector<16x256xbf16>
    tpu.vector_store %arg7[%c96, %c0_35], %98 {strides = array<i32>} : memref<144x256xbf16, #tpu.memory_space<vmem>>, vector<16x256xbf16>,
    %c240_i32_36 = arith.constant 240 : i32
    %100 = tpu.dynamic_rotate %44 by %c240_i32_36 dim 1 : vector<16x256xf32>, i32 -> vector<16x256xf32>
    %101 = arith.andi %22, %18 : vector<1x256xi1>
    %cst_37 = arith.constant 0.000000e+00 : f32
    %102 = vector.shape_cast %101 : vector<1x256xi1> to vector<1x256xi1>
    %103 = vector.broadcast %102 : vector<1x256xi1> to vector<16x256xi1>
    %104 = vector.broadcast %cst_37 : f32 to vector<16x256xf32>
    %105 = arith.select %103, %100, %104 : vector<16x256xi1>, vector<16x256xf32>
    %106 = arith.truncf %105 : vector<16x256xf32> to vector<16x256xbf16>
    %c112 = arith.constant 112 : index
    %c0_38 = arith.constant 0 : index
    %107 = vector.load %arg7[%c112, %c0_38] : memref<144x256xbf16, #tpu.memory_space<vmem>>, vector<16x256xbf16>
    tpu.vector_store %arg7[%c112, %c0_38], %106 {strides = array<i32>} : memref<144x256xbf16, #tpu.memory_space<vmem>>, vector<16x256xbf16>,
    %c239_i32 = arith.constant 239 : i32
    %108 = tpu.dynamic_rotate %44 by %c239_i32 dim 1 : vector<16x256xf32>, i32 -> vector<16x256xf32>
    %109 = arith.andi %22, %26 : vector<1x256xi1>
    %cst_39 = arith.constant 0.000000e+00 : f32
    %110 = vector.shape_cast %109 : vector<1x256xi1> to vector<1x256xi1>
    %111 = vector.broadcast %110 : vector<1x256xi1> to vector<16x256xi1>
    %112 = vector.broadcast %cst_39 : f32 to vector<16x256xf32>
    %113 = arith.select %111, %108, %112 : vector<16x256xi1>, vector<16x256xf32>
    %114 = arith.truncf %113 : vector<16x256xf32> to vector<16x256xbf16>
    %c128 = arith.constant 128 : index
    %c0_40 = arith.constant 0 : index
    %115 = vector.load %arg7[%c128, %c0_40] : memref<144x256xbf16, #tpu.memory_space<vmem>>, vector<16x256xbf16>
    tpu.vector_store %arg7[%c128, %c0_40], %114 {strides = array<i32>} : memref<144x256xbf16, #tpu.memory_space<vmem>>, vector<16x256xbf16>,
    %c0_41 = arith.constant 0 : index
    %c0_42 = arith.constant 0 : index
    %116 = vector.load %arg7[%c0_41, %c0_42] : memref<144x256xbf16, #tpu.memory_space<vmem>>, vector<144x256xbf16>
    %cst_43 = arith.constant dense<0.000000e+00> : vector<128x256xf32>
    %117 = tpu.matmul %29, %116, %cst_43 {dimension_numbers = #tpu.dot_dimension_numbers<[1], [0], [0], [1], [0, 0, 1, 1], [], []>} : vector<128x144xbf16>, vector<144x256xbf16>, vector<128x256xf32> -> vector<128x256xf32>
    %118 = vector.broadcast %30 : vector<128x1xf32> to vector<128x256xf32>
    %119 = arith.addf %117, %118 : vector<128x256xf32>
    %cst_44 = arith.constant 0.000000e+00 : f32
    %120 = vector.broadcast %cst_44 : f32 to vector<128x256xf32>
    %121 = arith.cmpf ogt, %119, %120 : vector<128x256xf32>
    %cst_45 = arith.constant 0.000000e+00 : f32
    %122 = vector.broadcast %cst_45 : f32 to vector<128x256xf32>
    %123 = arith.minimumf %119, %122 : vector<128x256xf32>
    %124 = math.exp %123 : vector<128x256xf32>
    %cst_46 = arith.constant 1.000000e+00 : f32
    %125 = vector.broadcast %cst_46 : f32 to vector<128x256xf32>
    %126 = arith.subf %124, %125 : vector<128x256xf32>
    %127 = arith.select %121, %119, %126 : vector<128x256xi1>, vector<128x256xf32>
    %c0_47 = arith.constant 0 : index
    %c0_48 = arith.constant 0 : index
    %c0_49 = arith.constant 0 : index
    %128 = vector.load %arg6[%c0_47, %c0_48, %c0_49] : memref<1x128x256xf32, #tpu.memory_space<vmem>>, vector<1x128x256xf32>
    %129 = vector.shape_cast %128 : vector<1x128x256xf32> to vector<128x256xf32>
    %130 = vector.shape_cast %127 : vector<128x256xf32> to vector<1x128x256xf32>
    tpu.vector_store %arg6[%c0_47, %c0_48, %c0_49], %130 {strides = array<i32>} : memref<1x128x256xf32, #tpu.memory_space<vmem>>, vector<1x128x256xf32>,
    return
  }
  func.func @transform_0(%arg0: i32) -> (i32, i32, i32) {
    %c0_i32 = arith.constant 0 : i32
    %c0_i32_0 = arith.constant 0 : i32
    %c0_i32_1 = arith.constant 0 : i32
    return %arg0, %c0_i32, %c0_i32_0 : i32, i32, i32
  }
  func.func @transform_1(%arg0: i32) -> (i32, i32) {
    %c0_i32 = arith.constant 0 : i32
    %c0_i32_0 = arith.constant 0 : i32
    %c0_i32_1 = arith.constant 0 : i32
    return %c0_i32, %c0_i32_0 : i32, i32
  }
  func.func @transform_2(%arg0: i32) -> (i32, i32) {
    %c0_i32 = arith.constant 0 : i32
    %c0_i32_0 = arith.constant 0 : i32
    %c0_i32_1 = arith.constant 0 : i32
    return %c0_i32, %c0_i32_0 : i32, i32
  }
  func.func @transform_3(%arg0: i32) -> (i32, i32) {
    %c0_i32 = arith.constant 0 : i32
    %c0_i32_0 = arith.constant 0 : i32
    %c0_i32_1 = arith.constant 0 : i32
    return %c0_i32, %c0_i32_0 : i32, i32
  }
  func.func @transform_4(%arg0: i32) -> (i32, i32) {
    %c0_i32 = arith.constant 0 : i32
    %c0_i32_0 = arith.constant 0 : i32
    %c0_i32_1 = arith.constant 0 : i32
    return %c0_i32, %c0_i32_0 : i32, i32
  }
  func.func @transform_5(%arg0: i32) -> (i32, i32, i32) {
    %c0_i32 = arith.constant 0 : i32
    %c0_i32_0 = arith.constant 0 : i32
    %c0_i32_1 = arith.constant 0 : i32
    return %arg0, %c0_i32, %c0_i32_0 : i32, i32, i32
  }
}

</mosaic_0001>

<llo_original>
// kernel: fire_forward.1
$region0: #{fire_forward.1}
  #allocation0 [shape = 'u32[]', space=smem, size = 0x4, offset = 0x4, fixed_abs, tag = 'smem constant byte address 0x4 - core index']
  #allocation1 [shape = 'u32[144,128]{1,0:T(1,128)}', space=vmem, size = 0x12000, scoped, tag = 'internal scratch']
  #allocation2 [shape = 'bf16[144,256]{1,0:T(16,128)(2,1)}', space=vmem, size = 0x12000, scoped, tag = 'scratch operand']
  %s0 = inlined_call_operand.vmem [shape: f32[2,32,256], index: 0, kind: input, shape index: {}]
  %s1 = inlined_call_operand.vmem [shape: bf16[16,32], index: 1, kind: input, shape index: {}]
  %s2 = inlined_call_operand.vmem [shape: f32[16,1], index: 2, kind: input, shape index: {}]
  %s3 = inlined_call_operand.vmem [shape: bf16[128,144], index: 3, kind: input, shape index: {}]
  %s4 = inlined_call_operand.vmem [shape: f32[128,1], index: 4, kind: input, shape index: {}]
  %s5 = inlined_call_operand.vmem [shape: f32[2,128,256], index: 5, kind: output, shape index: {}]
  %s6 = sld [smem:[#allocation0]]
  $region53: #{fire_forward.1} parent=0
    _
  %s8 = ssub.s32 1, %s6
  %s9 = scalar_select 0, %s8, %s6
  loop: start=0, step=1, limit=4
  $region2: #{fire_forward.1} parent=0 // loop_pre_header
    _
  $region3: #{fire_forward.1} parent=0 // loop_header
    %s11 = sphi 0, %s15
    %p12 = scmp.ge.s32.totalorder %s11, 4
    %s21 = sphi 0, %s23
    %s24 = sphi 0, %s21
    %s25 = sphi 0, %s24
    %s41 = sphi 0, %s25
    %s45 = sphi 0, %s45
    %s47 = sphi 0, %s45
    %s48 = sphi 0, %s47
    %s62 = sphi 0, %s48
    %s66 = sphi 0, %s66
    %s68 = sphi 0, %s66
    %s69 = sphi 0, %s68
    %s83 = sphi 0, %s69
    %s87 = sphi 0, %s87
    %s89 = sphi 0, %s87
    %s90 = sphi 0, %s89
    %s104 = sphi 0, %s90
    %s108 = sphi 0, %s108
    %s110 = sphi 0, %s108
    %s111 = sphi 0, %s110
    %s125 = sphi 0, %s111
    %s131 = sphi 0, %s133
    %s134 = sphi 0, %s131
    %s135 = sphi 0, %s134
    %s151 = sphi 0, %s135
  $region4: #{fire_forward.1} parent=0 // loop_header_branch
    %14 = sbr.rel (%p12) target = $region8
  $region5: #{fire_forward.1} parent=0 // loop_body
    %s16 = ssub.s32 %s11, 1
    %s17 = ssub.s32 %s11, 2
    %s18 = sadd.s32 %s11, 1
    %s19 = ssub.s32 %s11, %s18
    %p20 = scmp.eq.s32.totalorder %s19, 0
    %s22 = sadd.s32 %s21, 1
    %s23 = scalar_select %p20, %s21, %s22
    %p26 = pneg %p20
    %p27 = scmp.eq.s32.totalorder %s11, 1
    %p28 = por %p26, %p27
    %p29 = scmp.ne.s32.totalorder %s21, %s24
    %p30 = scmp.eq.s32.totalorder %s11, 0
    %p31 = por %p29, %p30
    %p32 = scmp.ne.s32.totalorder %s21, %s24
    %p33 = scmp.eq.s32.totalorder %s16, 1
    %p34 = por %p32, %p33
    %p35 = scmp.ne.s32.totalorder %s24, %s25
    %p36 = scmp.eq.s32.totalorder %s16, 0
    %p37 = por %p35, %p36
    %p38 = scmp.ne.s32.totalorder %s24, %s25
    %p39 = scmp.eq.s32.totalorder %s17, 1
    %p40 = por %p38, %p39
    %p42 = scmp.ne.s32.totalorder %s25, %s41
    %p43 = scmp.eq.s32.totalorder %s17, 0
    %p44 = por %p42, %p43
    %s46 = sadd.s32 %s45, 1
    %p49 = scmp.eq.s32.totalorder %s11, 1
    %p50 = scmp.ne.s32.totalorder %s45, %s47
    %p51 = scmp.eq.s32.totalorder %s11, 0
    %p52 = por %p50, %p51
    %p53 = scmp.ne.s32.totalorder %s45, %s47
    %p54 = scmp.eq.s32.totalorder %s16, 1
    %p55 = por %p53, %p54
    %p56 = scmp.ne.s32.totalorder %s47, %s48
    %p57 = scmp.eq.s32.totalorder %s16, 0
    %p58 = por %p56, %p57
    %p59 = scmp.ne.s32.totalorder %s47, %s48
    %p60 = scmp.eq.s32.totalorder %s17, 1
    %p61 = por %p59, %p60
    %p63 = scmp.ne.s32.totalorder %s48, %s62
    %p64 = scmp.eq.s32.totalorder %s17, 0
    %p65 = por %p63, %p64
    %s67 = sadd.s32 %s66, 1
    %p70 = scmp.eq.s32.totalorder %s11, 1
    %p71 = scmp.ne.s32.totalorder %s66, %s68
    %p72 = scmp.eq.s32.totalorder %s11, 0
    %p73 = por %p71, %p72
    %p74 = scmp.ne.s32.totalorder %s66, %s68
    %p75 = scmp.eq.s32.totalorder %s16, 1
    %p76 = por %p74, %p75
    %p77 = scmp.ne.s32.totalorder %s68, %s69
    %p78 = scmp.eq.s32.totalorder %s16, 0
    %p79 = por %p77, %p78
    %p80 = scmp.ne.s32.totalorder %s68, %s69
    %p81 = scmp.eq.s32.totalorder %s17, 1
    %p82 = por %p80, %p81
    %p84 = scmp.ne.s32.totalorder %s69, %s83
    %p85 = scmp.eq.s32.totalorder %s17, 0
    %p86 = por %p84, %p85
    %s88 = sadd.s32 %s87, 1
    %p91 = scmp.eq.s32.totalorder %s11, 1
    %p92 = scmp.ne.s32.totalorder %s87, %s89
    %p93 = scmp.eq.s32.totalorder %s11, 0
    %p94 = por %p92, %p93
    %p95 = scmp.ne.s32.totalorder %s87, %s89
    %p96 = scmp.eq.s32.totalorder %s16, 1
    %p97 = por %p95, %p96
    %p98 = scmp.ne.s32.totalorder %s89, %s90
    %p99 = scmp.eq.s32.totalorder %s16, 0
    %p100 = por %p98, %p99
    %p101 = scmp.ne.s32.totalorder %s89, %s90
    %p102 = scmp.eq.s32.totalorder %s17, 1
    %p103 = por %p101, %p102
    %p105 = scmp.ne.s32.totalorder %s90, %s104
    %p106 = scmp.eq.s32.totalorder %s17, 0
    %p107 = por %p105, %p106
    %s109 = sadd.s32 %s108, 1
    %p112 = scmp.eq.s32.totalorder %s11, 1
    %p113 = scmp.ne.s32.totalorder %s108, %s110
    %p114 = scmp.eq.s32.totalorder %s11, 0
    %p115 = por %p113, %p114
    %p116 = scmp.ne.s32.totalorder %s108, %s110
    %p117 = scmp.eq.s32.totalorder %s16, 1
    %p118 = por %p116, %p117
    %p119 = scmp.ne.s32.totalorder %s110, %s111
    %p120 = scmp.eq.s32.totalorder %s16, 0
    %p121 = por %p119, %p120
    %p122 = scmp.ne.s32.totalorder %s110, %s111
    %p123 = scmp.eq.s32.totalorder %s17, 1
    %p124 = por %p122, %p123
    %p126 = scmp.ne.s32.totalorder %s111, %s125
    %p127 = scmp.eq.s32.totalorder %s17, 0
    %p128 = por %p126, %p127
    %s129 = ssub.s32 %s11, %s18
    %p130 = scmp.eq.s32.totalorder %s129, 0
    %s132 = sadd.s32 %s131, 1
    %s133 = scalar_select %p130, %s131, %s132
    %p136 = pneg %p130
    %p137 = scmp.eq.s32.totalorder %s11, 1
    %p138 = por %p136, %p137
    %p139 = scmp.ne.s32.totalorder %s131, %s134
    %p140 = scmp.eq.s32.totalorder %s11, 0
    %p141 = por %p139, %p140
    %p142 = scmp.ne.s32.totalorder %s131, %s134
    %p143 = scmp.eq.s32.totalorder %s16, 1
    %p144 = por %p142, %p143
    %p145 = scmp.ne.s32.totalorder %s134, %s135
    %p146 = scmp.eq.s32.totalorder %s16, 0
    %p147 = por %p145, %p146
    %p148 = scmp.ne.s32.totalorder %s134, %s135
    %p149 = scmp.eq.s32.totalorder %s17, 1
    %p150 = por %p148, %p149
    %p152 = scmp.ne.s32.totalorder %s135, %s151
    %p153 = scmp.eq.s32.totalorder %s17, 0
    %p154 = por %p152, %p153
    %p155 = scmp.le.s32.totalorder 1, %s11
    %p156 = scmp.lt.s32.totalorder %s11, 3
    %p157 = pnand %p155, %p156
    %p158 = pneg %p157
    // Predicated region
    $region9: #{fire_forward.1} parent=5 // pred_check
      _
    $region10: #{fire_forward.1} parent=5 // pred_check_branch
      %160 = sbr.rel (%p157) target = $region12
    $region11: #{fire_forward.1} parent=5 // pred_region
      %s161 = ssub.s32 %s11, 1
      // Predicated region
      $region13: #{fire_forward.1} parent=11 // pred_check
        %p162 = pneg %p58
      $region14: #{fire_forward.1} parent=11 // pred_check_branch
        %164 = sbr.rel (%p162) target = $region16
      $region15: #{fire_forward.1} parent=11 // pred_region
        _
      $region16: #{fire_forward.1} parent=11 // pred_fallthru
        _
      // Predicated region
      $region17: #{fire_forward.1} parent=11 // pred_check
        %p165 = pneg %p79
      $region18: #{fire_forward.1} parent=11 // pred_check_branch
        %167 = sbr.rel (%p165) target = $region20
      $region19: #{fire_forward.1} parent=11 // pred_region
        _
      $region20: #{fire_forward.1} parent=11 // pred_fallthru
        _
      // Predicated region
      $region21: #{fire_forward.1} parent=11 // pred_check
        %p168 = pneg %p100
      $region22: #{fire_forward.1} parent=11 // pred_check_branch
        %170 = sbr.rel (%p168) target = $region24
      $region23: #{fire_forward.1} parent=11 // pred_region
        _
      $region24: #{fire_forward.1} parent=11 // pred_fallthru
        _
      // Predicated region
      $region25: #{fire_forward.1} parent=11 // pred_check
        %p171 = pneg %p121
      $region26: #{fire_forward.1} parent=11 // pred_check_branch
        %173 = sbr.rel (%p171) target = $region28
      $region27: #{fire_forward.1} parent=11 // pred_region
        _
      $region28: #{fire_forward.1} parent=11 // pred_fallthru
        _
    $region12: #{fire_forward.1} parent=5 // pred_fallthru
      _
    %p174 = scmp.lt.s32.totalorder %s11, 2
    // Predicated region
    $region29: #{fire_forward.1} parent=5 // pred_check
      %p175 = pneg %p174
    $region30: #{fire_forward.1} parent=5 // pred_check_branch
      %177 = sbr.rel (%p175) target = $region32
    $region31: #{fire_forward.1} parent=5 // pred_region
      // Predicated region
      $region33: #{fire_forward.1} parent=31 // pred_check
        %p178 = pneg %p31
      $region34: #{fire_forward.1} parent=31 // pred_check_branch
        %180 = sbr.rel (%p178) target = $region36
      $region35: #{fire_forward.1} parent=31 // pred_region
        %p181 = scmp.lt.s32.totalorder %s11, 1
        %s182 = scalar_select %p181, %s11, 1
        %s183 = smul.addr %s182, 8
        %s184 = smul.addr %s183, 8
        %s185 = scalar_lea.vmem %s0, %s184
      $region36: #{fire_forward.1} parent=31 // pred_fallthru
        _
    $region32: #{fire_forward.1} parent=5 // pred_fallthru
      _
    %p186 = scmp.le.s32.totalorder 1, %s11
    %p187 = scmp.lt.s32.totalorder %s11, 3
    %p188 = pnand %p186, %p187
    %p189 = pneg %p188
    // Predicated region
    $region37: #{fire_forward.1} parent=5 // pred_check
      _
    $region38: #{fire_forward.1} parent=5 // pred_check_branch
      %191 = sbr.rel (%p188) target = $region40
    $region39: #{fire_forward.1} parent=5 // pred_region
      %s192 = ssub.s32 %s11, 1
      %p193 = scmp.lt.s32.totalorder %s16, 1
      %s194 = scalar_select %p193, %s16, 1
      %s195 = smul.addr %s194, 8
      %s196 = smul.addr %s195, 8
      %s197 = scalar_lea.vmem %s0, %s196
      %p198 = pneg %p37
      %p199 = pneg %p34
      %p200 = pneg %p58
      %p201 = pneg %p55
      %p202 = pneg %p79
      %p203 = pneg %p76
      %p204 = pneg %p100
      %p205 = pneg %p97
      %p206 = pneg %p121
      %p207 = pneg %p118
      %p208 = pneg %p147
      %p209 = pneg %p144
      %p210 = scmp.lt.s32.totalorder %s16, 1
      %s211 = scalar_select %p210, %s16, 1
      %s212 = smul.addr %s211, 32
      %s213 = smul.addr %s212, 8
      %s214 = scalar_lea.vmem %s5, %s213
      %p215 = scmp.lt.s32.totalorder %s16, 1
      %s216 = scalar_select %p215, %s16, 1
      %s217 = smul.addr %s216, 8
      %s218 = smul.addr %s217, 8
      %s219 = scalar_lea.vmem %s0, %s218
      %p220 = scmp.lt.s32.totalorder %s16, 1
      %s221 = scalar_select %p220, %s16, 1
      %s222 = smul.addr %s221, 32
      %s223 = smul.addr %s222, 8
      %s224 = scalar_lea.vmem %s5, %s223
      %v226 = vlaneseq
      %v227 = vand.u32 %v226, 127
      %v228 = vadd.s32 %v227, 128
      %vm229 = vcmp.lt.s32.totalorder %v227, 0
      %v230 = vsub.s32 0, %v227
      %v231 = vsel %vm229, %v230, %v227
      %v232 = vshrl.u32 %v231, 4
      %v233 = vand.u32 %v231, 15
      %v234 = vsub.s32 0, %v233
      %v235 = vsel %vm229, %v234, %v233
      %vm236 = vcmp.lt.s32.totalorder %v228, 0
      %v237 = vsub.s32 0, %v228
      %v238 = vsel %vm236, %v237, %v228
      %v239 = vshrl.u32 %v238, 4
      %v240 = vand.u32 %v238, 15
      %v241 = vsub.s32 0, %v240
      %v242 = vsel %vm236, %v241, %v240
      %vm243 = vcmp.ne.s32.totalorder %v235, 0
      %vm244 = vcmp.ne.s32.totalorder %v242, 0
      %vm245 = vcmp.lt.s32.totalorder %v235, 0
      %vm246 = vcmp.lt.s32.totalorder %v242, 0
      %vm247 = vmand %vm245, %vm243
      %vm248 = vmand %vm246, %vm244
      %v249 = vadd.s32 %v235, 16
      %v250 = vadd.s32 %v242, 16
      %v251 = vsel %vm247, %v249, %v235
      %v252 = vsel %vm248, %v250, %v242
      %vm253 = vcmp.ge.s32.totalorder %v227, 0
      %vm254 = vcmp.ge.s32.totalorder %v228, 0
      %vm255 = vcmp.ge.s32.totalorder %v227, 16
      %vm256 = vcmp.ge.s32.totalorder %v228, 16
      %vm257 = vcmp.lt.s32.totalorder %v227, 240
      %vm258 = vcmp.lt.s32.totalorder %v228, 240
      %vm259 = vcmp.ge.s32.totalorder %v251, 1
      %vm260 = vcmp.ge.s32.totalorder %v252, 1
      %vm261 = vcmp.le.s32.totalorder %v251, 14
      %vm262 = vcmp.le.s32.totalorder %v252, 14
      %v263 = vld [vmem:[%s1] sm:$0xf]
      %v264 = vld [vmem:[%s1 + $0x4] sm:$0xf]
      %v265 = vld [vmem:[%s2] sm:$0xff]
      %v266 = vld [vmem:[%s2 + $0x8] sm:$0xff]
      %v267 = vld [vmem:[%s3] sm:$0xff]
      %v268 = vld [vmem:[%s3 + $0x8] sm:$0xff]
      %v269 = vld [vmem:[%s3 + $0x10] sm:$0xff]
      %v270 = vld [vmem:[%s3 + $0x18] sm:$0xff]
      %v271 = vld [vmem:[%s3 + $0x20] sm:$0xff]
      %v272 = vld [vmem:[%s3 + $0x28] sm:$0xff]
      %v273 = vld [vmem:[%s3 + $0x30] sm:$0xff]
      %v274 = vld [vmem:[%s3 + $0x38] sm:$0xff]
      %v275 = vld [vmem:[%s3 + $0x40] sm:$0xff]
      %v276 = vld [vmem:[%s3 + $0x48] sm:$0xff]
      %v277 = vld [vmem:[%s3 + $0x50] sm:$0xff]
      %v278 = vld [vmem:[%s3 + $0x58] sm:$0xff]
      %v279 = vld [vmem:[%s3 + $0x60] sm:$0xff]
      %v280 = vld [vmem:[%s3 + $0x68] sm:$0xff]
      %v281 = vld [vmem:[%s3 + $0x70] sm:$0xff]
      %v282 = vld [vmem:[%s3 + $0x78] sm:$0xff]
      %v283 = vld [vmem:[%s4] sm:$0xff]
      %v284 = vld [vmem:[%s4 + $0x8] sm:$0xff]
      %v285 = vld [vmem:[%s4 + $0x10] sm:$0xff]
      %v286 = vld [vmem:[%s4 + $0x18] sm:$0xff]
      %v287 = vld [vmem:[%s4 + $0x20] sm:$0xff]
      %v288 = vld [vmem:[%s4 + $0x28] sm:$0xff]
      %v289 = vld [vmem:[%s4 + $0x30] sm:$0xff]
      %v290 = vld [vmem:[%s4 + $0x38] sm:$0xff]
      %v291 = vld [vmem:[%s4 + $0x40] sm:$0xff]
      %v292 = vld [vmem:[%s4 + $0x48] sm:$0xff]
      %v293 = vld [vmem:[%s4 + $0x50] sm:$0xff]
      %v294 = vld [vmem:[%s4 + $0x58] sm:$0xff]
      %v295 = vld [vmem:[%s4 + $0x60] sm:$0xff]
      %v296 = vld [vmem:[%s4 + $0x68] sm:$0xff]
      %v297 = vld [vmem:[%s4 + $0x70] sm:$0xff]
      %v298 = vld [vmem:[%s4 + $0x78] sm:$0xff]
      %v299 = vld [vmem:[%s219] sm:$0xff]
      %v300 = vld [vmem:[%s219 + $0x8] sm:$0xff]
      %v301 = vld [vmem:[%s219 + $0x10] sm:$0xff]
      %v302 = vld [vmem:[%s219 + $0x18] sm:$0xff]
      %v303 = vld [vmem:[%s219 + $0x20] sm:$0xff]
      %v304 = vld [vmem:[%s219 + $0x28] sm:$0xff]
      %v305 = vld [vmem:[%s219 + $0x30] sm:$0xff]
      %v306 = vld [vmem:[%s219 + $0x38] sm:$0xff]
      %v307 = vpack.c.bf16 %v301, %v299
      %v308 = vpack.c.bf16 %v302, %v300
      %v309 = vpack.c.bf16 %v305, %v303
      %v310 = vpack.c.bf16 %v306, %v304
      %312 = vset.pattern.permute.xlu0 0
      %313 = vperm.xlu0 %312, %v265
      %v314 = vpop.permute.xlu0 %313
      %317 = vset.pattern.permute.xlu0 0
      %318 = vperm.xlu0 %317, %v266
      %v319 = vpop.permute.xlu0 %318
      %v323 = vunpack.c.l.b16 %v263
      %v324 = vunpack.c.l.b16 %v264
      %v325 = vpack.c.b16 %v324, %v323
      %vm326 = vcmask 261120
      %v328 = vsel %vm326, %v325, 0
      %330 = vmatprep.subr.bf16.mxu0 %v308
      %331 = vmatpush1.bf16.msra.mxu0 %v307
      %332 = vmatprep.subr.bf16.mxu0 %v310
      %333 = vmatpush1.bf16.msra.mxu0 %v309
      %334 = vmatprep.subr.bf16.mxu0 0
      %335 = vmatpush1.bf16.msra.mxu0 0
      %336 = vmatprep.subr.bf16.mxu0 0
      %337 = vmatpush1.bf16.msra.mxu0 0
      %338 = vmatprep.subr.bf16.mxu0 0
      %339 = vmatpush1.bf16.msra.mxu0 0
      %340 = vmatprep.subr.bf16.mxu0 0
      %341 = vmatpush1.bf16.msra.mxu0 0
      %342 = vmatprep.subr.bf16.mxu0 0
      %343 = vmatpush1.bf16.msra.mxu0 0
      %344 = vmatprep.subr.bf16.mxu0 0
      %345 = vmatpush1.bf16.msra.mxu0 0
      %346 = vmatprep.subr.bf16.mxu0 0
      %347 = vmatpush1.bf16.msra.mxu0 0
      %348 = vmatprep.subr.bf16.mxu0 0
      %349 = vmatpush1.bf16.msra.mxu0 0
      %350 = vmatprep.subr.bf16.mxu0 0
      %351 = vmatpush1.bf16.msra.mxu0 0
      %352 = vmatprep.subr.bf16.mxu0 0
      %353 = vmatpush1.bf16.msra.mxu0 0
      %354 = vmatprep.subr.bf16.mxu0 0
      %355 = vmatpush1.bf16.msra.mxu0 0
      %356 = vmatprep.subr.bf16.mxu0 0
      %357 = vmatpush1.bf16.msra.mxu0 0
      %358 = vmatprep.subr.bf16.mxu0 0
      %359 = vmatpush1.bf16.msra.mxu0 0
      %360 = vmatprep.subr.bf16.mxu0 0
      %361 = vmatpush1.bf16.msra.mxu0 0
      %362 = vmatprep.mubr.bf16.mxu0 0
      %363 = vmatmul.mubr.bf16.gmra.mrb[0].mxu0 %v328
      %v364 = vpop.f32.mrb[0].mxu0
      %v365 = vadd.f32 %v314, %v364
      %v366 = vpop.f32.mrb[0].mxu0
      %v367 = vadd.f32 %v314, %v366
      %v368 = vpop.f32.mrb[0].mxu0
      %v369 = vadd.f32 %v319, %v368
      %v370 = vpop.f32.mrb[0].mxu0
      %v371 = vadd.f32 %v319, %v370
      %372 = vdwg.mxu0
      %vm373 = vcmp.gt.f32.partialorder %v365, 0.0
      %vm374 = vcmp.gt.f32.partialorder %v367, 0.0
      %vm375 = vcmp.gt.f32.partialorder %v369, 0.0
      %vm376 = vcmp.gt.f32.partialorder %v371, 0.0
      %v377 = vmin.f32 %v365, 0.0
      %v378 = vmin.f32 %v367, 0.0
      %v379 = vmin.f32 %v369, 0.0
      %v380 = vmin.f32 %v371, 0.0
      %v381 = vmul.f32 %v377, 1.442695
      %v382 = vpow.pop %v381
      %v383 = vmul.f32 %v378, 1.442695
      %v384 = vpow.pop %v383
      %v385 = vmul.f32 %v379, 1.442695
      %v386 = vpow.pop %v385
      %v387 = vmul.f32 %v380, 1.442695
      %v388 = vpow.pop %v387
      %v389 = vsub.f32 %v382, 1.0
      %v390 = vsub.f32 %v384, 1.0
      %v391 = vsub.f32 %v386, 1.0
      %v392 = vsub.f32 %v388, 1.0
      %v393 = vsel %vm373, %v365, %v389
      %v394 = vsel %vm374, %v367, %v390
      %v395 = vsel %vm375, %v369, %v391
      %v396 = vsel %vm376, %v371, %v392
      %397 = vrot.lane.b32.xlu0 %v393, 17
      %v398 = vpop.permute.xlu0 %397
      %399 = vrot.lane.b32.xlu0 %v395, 17
      %v400 = vpop.permute.xlu0 %399
      %401 = vrot.lane.b32.xlu0 %v394, 17
      %v402 = vpop.permute.xlu0 %401
      %403 = vrot.lane.b32.xlu0 %v396, 17
      %v404 = vpop.permute.xlu0 %403
      %vm405 = vcmp.lt.s32.totalorder %v227, 17
      %v406 = vsel %vm405, %v398, %v402
      %v407 = vsel %vm405, %v400, %v404
      %v408 = vsel %vm405, %v402, %v398
      %v409 = vsel %vm405, %v404, %v400
      %vm410 = vmand %vm255, %vm259
      %vm411 = vmand %vm256, %vm260
      %v412 = vsel %vm410, 1, 0
      %v413 = vsel %vm411, 1, 0
      %vm414 = vcmp.eq.s32.totalorder %v412, 1
      %vm415 = vcmp.eq.s32.totalorder %v413, 1
      %v416 = vsel %vm414, %v408, 0.0
      %v417 = vsel %vm415, %v406, 0.0
      %v418 = vsel %vm414, %v409, 0.0
      %v419 = vsel %vm415, %v407, 0.0
      %v420 = vpack.c.bf16 %v418, %v416
      %v421 = vpack.c.bf16 %v419, %v417
      %422 = vst [vmem:[#allocation2] sm:$0xff] %v420
      %423 = vst [vmem:[#allocation2 + $0x8] sm:$0xff] %v421
      %424 = vrot.lane.b32.xlu0 %v393, 16
      %v425 = vpop.permute.xlu0 %424
      %426 = vrot.lane.b32.xlu0 %v395, 16
      %v427 = vpop.permute.xlu0 %426
      %428 = vrot.lane.b32.xlu0 %v394, 16
      %v429 = vpop.permute.xlu0 %428
      %430 = vrot.lane.b32.xlu0 %v396, 16
      %v431 = vpop.permute.xlu0 %430
      %vm432 = vcmp.lt.s32.totalorder %v227, 16
      %v433 = vsel %vm432, %v425, %v429
      %v434 = vsel %vm432, %v427, %v431
      %v435 = vsel %vm432, %v429, %v425
      %v436 = vsel %vm432, %v431, %v427
      %vm437 = vmand %vm255, %vm253
      %vm438 = vmand %vm256, %vm254
      %v439 = vsel %vm437, 1, 0
      %v440 = vsel %vm438, 1, 0
      %vm441 = vcmp.eq.s32.totalorder %v439, 1
      %vm442 = vcmp.eq.s32.totalorder %v440, 1
      %v443 = vsel %vm441, %v435, 0.0
      %v444 = vsel %vm442, %v433, 0.0
      %v445 = vsel %vm441, %v436, 0.0
      %v446 = vsel %vm442, %v434, 0.0
      %v447 = vpack.c.bf16 %v445, %v443
      %v448 = vpack.c.bf16 %v446, %v444
      %449 = vst [vmem:[#allocation2 + $0x10] sm:$0xff] %v447
      %450 = vst [vmem:[#allocation2 + $0x18] sm:$0xff] %v448
      %451 = vrot.lane.b32.xlu0 %v393, 15
      %v452 = vpop.permute.xlu0 %451
      %453 = vrot.lane.b32.xlu0 %v395, 15
      %v454 = vpop.permute.xlu0 %453
      %455 = vrot.lane.b32.xlu0 %v394, 15
      %v456 = vpop.permute.xlu0 %455
      %457 = vrot.lane.b32.xlu0 %v396, 15
      %v458 = vpop.permute.xlu0 %457
      %vm459 = vcmp.lt.s32.totalorder %v227, 15
      %v460 = vsel %vm459, %v452, %v456
      %v461 = vsel %vm459, %v454, %v458
      %v462 = vsel %vm459, %v456, %v452
      %v463 = vsel %vm459, %v458, %v454
      %vm464 = vmand %vm255, %vm261
      %vm465 = vmand %vm256, %vm262
      %v466 = vsel %vm464, 1, 0
      %v467 = vsel %vm465, 1, 0
      %vm468 = vcmp.eq.s32.totalorder %v466, 1
      %vm469 = vcmp.eq.s32.totalorder %v467, 1
      %v470 = vsel %vm468, %v462, 0.0
      %v471 = vsel %vm469, %v460, 0.0
      %v472 = vsel %vm468, %v463, 0.0
      %v473 = vsel %vm469, %v461, 0.0
      %v474 = vpack.c.bf16 %v472, %v470
      %v475 = vpack.c.bf16 %v473, %v471
      %476 = vst [vmem:[#allocation2 + $0x20] sm:$0xff] %v474
      %477 = vst [vmem:[#allocation2 + $0x28] sm:$0xff] %v475
      %478 = vrot.lane.b32.xlu0 %v393, 1
      %v479 = vpop.permute.xlu0 %478
      %480 = vrot.lane.b32.xlu0 %v395, 1
      %v481 = vpop.permute.xlu0 %480
      %482 = vrot.lane.b32.xlu0 %v394, 1
      %v483 = vpop.permute.xlu0 %482
      %484 = vrot.lane.b32.xlu0 %v396, 1
      %v485 = vpop.permute.xlu0 %484
      %vm486 = vcmp.lt.s32.totalorder %v227, 1
      %v487 = vsel %vm486, %v479, %v483
      %v488 = vsel %vm486, %v481, %v485
      %v489 = vsel %vm486, %v483, %v479
      %v490 = vsel %vm486, %v485, %v481
      %vm491 = vmand %vm253, %vm259
      %vm492 = vmand %vm254, %vm260
      %v493 = vsel %vm491, 1, 0
      %v494 = vsel %vm492, 1, 0
      %vm495 = vcmp.eq.s32.totalorder %v493, 1
      %vm496 = vcmp.eq.s32.totalorder %v494, 1
      %v497 = vsel %vm495, %v489, 0.0
      %v498 = vsel %vm496, %v487, 0.0
      %v499 = vsel %vm495, %v490, 0.0
      %v500 = vsel %vm496, %v488, 0.0
      %v501 = vpack.c.bf16 %v499, %v497
      %v502 = vpack.c.bf16 %v500, %v498
      %503 = vst [vmem:[#allocation2 + $0x30] sm:$0xff] %v501
      %504 = vst [vmem:[#allocation2 + $0x38] sm:$0xff] %v502
      %v505 = vsel %vm253, 1, 0
      %v506 = vsel %vm254, 1, 0
      %vm507 = vcmp.eq.s32.totalorder %v505, 1
      %vm508 = vcmp.eq.s32.totalorder %v506, 1
      %v509 = vsel %vm507, %v393, 0.0
      %v510 = vsel %vm508, %v394, 0.0
      %v511 = vsel %vm507, %v395, 0.0
      %v512 = vsel %vm508, %v396, 0.0
      %v513 = vpack.c.bf16 %v511, %v509
      %v514 = vpack.c.bf16 %v512, %v510
      %515 = vst [vmem:[#allocation2 + $0x40] sm:$0xff] %v513
      %516 = vst [vmem:[#allocation2 + $0x48] sm:$0xff] %v514
      %517 = vrot.lane.b32.xlu0 %v393, 127
      %v518 = vpop.permute.xlu0 %517
      %519 = vrot.lane.b32.xlu0 %v395, 127
      %v520 = vpop.permute.xlu0 %519
      %521 = vrot.lane.b32.xlu0 %v394, 127
      %v522 = vpop.permute.xlu0 %521
      %523 = vrot.lane.b32.xlu0 %v396, 127
      %v524 = vpop.permute.xlu0 %523
      %vm525 = vcmp.lt.s32.totalorder %v227, 127
      %v526 = vsel %vm525, %v518, %v522
      %v527 = vsel %vm525, %v520, %v524
      %v528 = vsel %vm525, %v522, %v518
      %v529 = vsel %vm525, %v524, %v520
      %vm530 = vmand %vm253, %vm261
      %vm531 = vmand %vm254, %vm262
      %v532 = vsel %vm530, 1, 0
      %v533 = vsel %vm531, 1, 0
      %vm534 = vcmp.eq.s32.totalorder %v532, 1
      %vm535 = vcmp.eq.s32.totalorder %v533, 1
      %v536 = vsel %vm534, %v526, 0.0
      %v537 = vsel %vm535, %v528, 0.0
      %v538 = vsel %vm534, %v527, 0.0
      %v539 = vsel %vm535, %v529, 0.0
      %v540 = vpack.c.bf16 %v538, %v536
      %v541 = vpack.c.bf16 %v539, %v537
      %542 = vst [vmem:[#allocation2 + $0x50] sm:$0xff] %v540
      %543 = vst [vmem:[#allocation2 + $0x58] sm:$0xff] %v541
      %544 = vrot.lane.b32.xlu0 %v393, 113
      %v545 = vpop.permute.xlu0 %544
      %546 = vrot.lane.b32.xlu0 %v395, 113
      %v547 = vpop.permute.xlu0 %546
      %548 = vrot.lane.b32.xlu0 %v394, 113
      %v549 = vpop.permute.xlu0 %548
      %550 = vrot.lane.b32.xlu0 %v396, 113
      %v551 = vpop.permute.xlu0 %550
      %vm552 = vcmp.lt.s32.totalorder %v227, 113
      %v553 = vsel %vm552, %v545, %v549
      %v554 = vsel %vm552, %v547, %v551
      %v555 = vsel %vm552, %v549, %v545
      %v556 = vsel %vm552, %v551, %v547
      %vm557 = vmand %vm257, %vm259
      %vm558 = vmand %vm258, %vm260
      %v559 = vsel %vm557, 1, 0
      %v560 = vsel %vm558, 1, 0
      %vm561 = vcmp.eq.s32.totalorder %v559, 1
      %vm562 = vcmp.eq.s32.totalorder %v560, 1
      %v563 = vsel %vm561, %v553, 0.0
      %v564 = vsel %vm562, %v555, 0.0
      %v565 = vsel %vm561, %v554, 0.0
      %v566 = vsel %vm562, %v556, 0.0
      %v567 = vpack.c.bf16 %v565, %v563
      %v568 = vpack.c.bf16 %v566, %v564
      %569 = vst [vmem:[#allocation2 + $0x60] sm:$0xff] %v567
      %570 = vst [vmem:[#allocation2 + $0x68] sm:$0xff] %v568
      %571 = vrot.lane.b32.xlu0 %v393, 112
      %v572 = vpop.permute.xlu0 %571
      %573 = vrot.lane.b32.xlu0 %v395, 112
      %v574 = vpop.permute.xlu0 %573
      %575 = vrot.lane.b32.xlu0 %v394, 112
      %v576 = vpop.permute.xlu0 %575
      %577 = vrot.lane.b32.xlu0 %v396, 112
      %v578 = vpop.permute.xlu0 %577
      %vm579 = vcmp.lt.s32.totalorder %v227, 112
      %v580 = vsel %vm579, %v572, %v576
      %v581 = vsel %vm579, %v574, %v578
      %v582 = vsel %vm579, %v576, %v572
      %v583 = vsel %vm579, %v578, %v574
      %vm584 = vmand %vm257, %vm253
      %vm585 = vmand %vm258, %vm254
      %v586 = vsel %vm584, 1, 0
      %v587 = vsel %vm585, 1, 0
      %vm588 = vcmp.eq.s32.totalorder %v586, 1
      %vm589 = vcmp.eq.s32.totalorder %v587, 1
      %v590 = vsel %vm588, %v580, 0.0
      %v591 = vsel %vm589, %v582, 0.0
      %v592 = vsel %vm588, %v581, 0.0
      %v593 = vsel %vm589, %v583, 0.0
      %v594 = vpack.c.bf16 %v592, %v590
      %v595 = vpack.c.bf16 %v593, %v591
      %596 = vst [vmem:[#allocation2 + $0x70] sm:$0xff] %v594
      %597 = vst [vmem:[#allocation2 + $0x78] sm:$0xff] %v595
      %598 = vrot.lane.b32.xlu0 %v393, 111
      %v599 = vpop.permute.xlu0 %598
      %600 = vrot.lane.b32.xlu0 %v395, 111
      %v601 = vpop.permute.xlu0 %600
      %602 = vrot.lane.b32.xlu0 %v394, 111
      %v603 = vpop.permute.xlu0 %602
      %604 = vrot.lane.b32.xlu0 %v396, 111
      %v605 = vpop.permute.xlu0 %604
      %vm606 = vcmp.lt.s32.totalorder %v227, 111
      %v607 = vsel %vm606, %v599, %v603
      %v608 = vsel %vm606, %v601, %v605
      %v609 = vsel %vm606, %v603, %v599
      %v610 = vsel %vm606, %v605, %v601
      %vm611 = vmand %vm257, %vm261
      %vm612 = vmand %vm258, %vm262
      %v613 = vsel %vm611, 1, 0
      %v614 = vsel %vm612, 1, 0
      %vm615 = vcmp.eq.s32.totalorder %v613, 1
      %vm616 = vcmp.eq.s32.totalorder %v614, 1
      %v617 = vsel %vm615, %v607, 0.0
      %v618 = vsel %vm616, %v609, 0.0
      %v619 = vsel %vm615, %v608, 0.0
      %v620 = vsel %vm616, %v610, 0.0
      %v621 = vpack.c.bf16 %v619, %v617
      %v622 = vpack.c.bf16 %v620, %v618
      %623 = vst [vmem:[#allocation2 + $0x80] sm:$0xff] %v621
      %624 = vst [vmem:[#allocation2 + $0x88] sm:$0xff] %v622
      %v625 = vld [vmem:[#allocation2] sm:$0xff]
      %v626 = vld [vmem:[#allocation2 + $0x8] sm:$0xff]
      %v627 = vld [vmem:[#allocation2 + $0x10] sm:$0xff]
      %v628 = vld [vmem:[#allocation2 + $0x18] sm:$0xff]
      %v629 = vld [vmem:[#allocation2 + $0x20] sm:$0xff]
      %v630 = vld [vmem:[#allocation2 + $0x28] sm:$0xff]
      %v631 = vld [vmem:[#allocation2 + $0x30] sm:$0xff]
      %v632 = vld [vmem:[#allocation2 + $0x38] sm:$0xff]
      %v633 = vld [vmem:[#allocation2 + $0x40] sm:$0xff]
      %v634 = vld [vmem:[#allocation2 + $0x48] sm:$0xff]
      %v635 = vld [vmem:[#allocation2 + $0x50] sm:$0xff]
      %v636 = vld [vmem:[#allocation2 + $0x58] sm:$0xff]
      %v637 = vld [vmem:[#allocation2 + $0x60] sm:$0xff]
      %v638 = vld [vmem:[#allocation2 + $0x68] sm:$0xff]
      %v639 = vld [vmem:[#allocation2 + $0x70] sm:$0xff]
      %v640 = vld [vmem:[#allocation2 + $0x78] sm:$0xff]
      %v641 = vld [vmem:[#allocation2 + $0x80] sm:$0xff]
      %v642 = vld [vmem:[#allocation2 + $0x88] sm:$0xff]
      %644 = vset.pattern.permute.xlu0 0
      %645 = vperm.xlu0 %644, %v283
      %v646 = vpop.permute.xlu0 %645
      %649 = vset.pattern.permute.xlu0 0
      %650 = vperm.xlu0 %649, %v284
      %v651 = vpop.permute.xlu0 %650
      %654 = vset.pattern.permute.xlu0 0
      %655 = vperm.xlu0 %654, %v285
      %v656 = vpop.permute.xlu0 %655
      %659 = vset.pattern.permute.xlu0 0
      %660 = vperm.xlu0 %659, %v286
      %v661 = vpop.permute.xlu0 %660
      %664 = vset.pattern.permute.xlu0 0
      %665 = vperm.xlu0 %664, %v287
      %v666 = vpop.permute.xlu0 %665
      %669 = vset.pattern.permute.xlu0 0
      %670 = vperm.xlu0 %669, %v288
      %v671 = vpop.permute.xlu0 %670
      %674 = vset.pattern.permute.xlu0 0
      %675 = vperm.xlu0 %674, %v289
      %v676 = vpop.permute.xlu0 %675
      %679 = vset.pattern.permute.xlu0 0
      %680 = vperm.xlu0 %679, %v290
      %v681 = vpop.permute.xlu0 %680
      %684 = vset.pattern.permute.xlu0 0
      %685 = vperm.xlu0 %684, %v291
      %v686 = vpop.permute.xlu0 %685
      %689 = vset.pattern.permute.xlu0 0
      %690 = vperm.xlu0 %689, %v292
      %v691 = vpop.permute.xlu0 %690
      %694 = vset.pattern.permute.xlu0 0
      %695 = vperm.xlu0 %694, %v293
      %v696 = vpop.permute.xlu0 %695
      %699 = vset.pattern.permute.xlu0 0
      %700 = vperm.xlu0 %699, %v294
      %v701 = vpop.permute.xlu0 %700
      %704 = vset.pattern.permute.xlu0 0
      %705 = vperm.xlu0 %704, %v295
      %v706 = vpop.permute.xlu0 %705
      %709 = vset.pattern.permute.xlu0 0
      %710 = vperm.xlu0 %709, %v296
      %v711 = vpop.permute.xlu0 %710
      %714 = vset.pattern.permute.xlu0 0
      %715 = vperm.xlu0 %714, %v297
      %v716 = vpop.permute.xlu0 %715
      %719 = vset.pattern.permute.xlu0 0
      %720 = vperm.xlu0 %719, %v298
      %v721 = vpop.permute.xlu0 %720
      %v739 = vunpack.c.l.b16 %v267
      %v740 = vunpack.c.h.b16 %v267
      %v741 = vunpack.c.l.b16 %v268
      %v742 = vunpack.c.h.b16 %v268
      %v743 = vunpack.c.l.b16 %v269
      %v744 = vunpack.c.h.b16 %v269
      %v745 = vunpack.c.l.b16 %v270
      %v746 = vunpack.c.h.b16 %v270
      %v747 = vunpack.c.l.b16 %v271
      %v748 = vunpack.c.h.b16 %v271
      %v749 = vunpack.c.l.b16 %v272
      %v750 = vunpack.c.h.b16 %v272
      %v751 = vunpack.c.l.b16 %v273
      %v752 = vunpack.c.h.b16 %v273
      %v753 = vunpack.c.l.b16 %v274
      %v754 = vunpack.c.h.b16 %v274
      %v755 = vunpack.c.l.b16 %v275
      %v756 = vunpack.c.h.b16 %v275
      %v757 = vunpack.c.l.b16 %v276
      %v758 = vunpack.c.h.b16 %v276
      %v759 = vunpack.c.l.b16 %v277
      %v760 = vunpack.c.h.b16 %v277
      %v761 = vunpack.c.l.b16 %v278
      %v762 = vunpack.c.h.b16 %v278
      %v763 = vunpack.c.l.b16 %v279
      %v764 = vunpack.c.h.b16 %v279
      %v765 = vunpack.c.l.b16 %v280
      %v766 = vunpack.c.h.b16 %v280
      %v767 = vunpack.c.l.b16 %v281
      %v768 = vunpack.c.h.b16 %v281
      %v769 = vunpack.c.l.b16 %v282
      %v770 = vunpack.c.h.b16 %v282
      %v771 = vpack.c.b16 %v741, %v739
      %v772 = vpack.c.b16 %v742, %v740
      %v773 = vpack.c.b16 %v745, %v743
      %v774 = vpack.c.b16 %v746, %v744
      %v775 = vpack.c.b16 %v749, %v747
      %v776 = vpack.c.b16 %v750, %v748
      %v777 = vpack.c.b16 %v753, %v751
      %v778 = vpack.c.b16 %v754, %v752
      %v779 = vpack.c.b16 %v757, %v755
      %v780 = vpack.c.b16 %v758, %v756
      %v781 = vpack.c.b16 %v761, %v759
      %v782 = vpack.c.b16 %v762, %v760
      %v783 = vpack.c.b16 %v765, %v763
      %v784 = vpack.c.b16 %v766, %v764
      %v785 = vpack.c.b16 %v769, %v767
      %v786 = vpack.c.b16 %v770, %v768
      %vm795 = vcmask 130048
      %v797 = vsel %vm795, %v772, 0
      %v800 = vsel %vm795, %v774, 0
      %v803 = vsel %vm795, %v776, 0
      %v806 = vsel %vm795, %v778, 0
      %v809 = vsel %vm795, %v780, 0
      %v812 = vsel %vm795, %v782, 0
      %v815 = vsel %vm795, %v784, 0
      %v818 = vsel %vm795, %v786, 0
      %820 = vmatprep.subr.bf16.mxu0 %v626
      %821 = vmatpush1.bf16.msra.mxu0 %v625
      %822 = vmatprep.subr.bf16.mxu0 %v628
      %823 = vmatpush1.bf16.msra.mxu0 %v627
      %824 = vmatprep.subr.bf16.mxu0 %v630
      %825 = vmatpush1.bf16.msra.mxu0 %v629
      %826 = vmatprep.subr.bf16.mxu0 %v632
      %827 = vmatpush1.bf16.msra.mxu0 %v631
      %828 = vmatprep.subr.bf16.mxu0 %v634
      %829 = vmatpush1.bf16.msra.mxu0 %v633
      %830 = vmatprep.subr.bf16.mxu0 %v636
      %831 = vmatpush1.bf16.msra.mxu0 %v635
      %832 = vmatprep.subr.bf16.mxu0 %v638
      %833 = vmatpush1.bf16.msra.mxu0 %v637
      %834 = vmatprep.subr.bf16.mxu0 %v640
      %835 = vmatpush1.bf16.msra.mxu0 %v639
      %836 = vmatprep.subr.bf16.mxu0 %v642
      %837 = vmatpush1.bf16.msra.mxu0 %v641
      %838 = vmatprep.subr.bf16.mxu0 0
      %839 = vmatpush1.bf16.msra.mxu0 0
      %840 = vmatprep.subr.bf16.mxu0 0
      %841 = vmatpush1.bf16.msra.mxu0 0
      %842 = vmatprep.subr.bf16.mxu0 0
      %843 = vmatpush1.bf16.msra.mxu0 0
      %844 = vmatprep.subr.bf16.mxu0 0
      %845 = vmatpush1.bf16.msra.mxu0 0
      %846 = vmatprep.subr.bf16.mxu0 0
      %847 = vmatpush1.bf16.msra.mxu0 0
      %848 = vmatprep.subr.bf16.mxu0 0
      %849 = vmatpush1.bf16.msra.mxu0 0
      %850 = vmatprep.subr.bf16.mxu0 0
      %851 = vmatpush1.bf16.msra.mxu0 0
      %852 = vmatprep.mubr.bf16.mxu0 %v797
      %853 = vmatmul.mubr.bf16.gmra.mrb[0].mxu0 %v771
      %v854 = vpop.f32.mrb[0].mxu0
      %v855 = vadd.f32 %v646, %v854
      %v856 = vpop.f32.mrb[0].mxu0
      %v857 = vadd.f32 %v646, %v856
      %v858 = vpop.f32.mrb[0].mxu0
      %v859 = vadd.f32 %v651, %v858
      %v860 = vpop.f32.mrb[0].mxu0
      %v861 = vadd.f32 %v651, %v860
      %862 = vmatprep.mubr.bf16.mxu0 %v800
      %863 = vmatmul.mubr.bf16.gmra.mrb[0].mxu0 %v773
      %v864 = vpop.f32.mrb[0].mxu0
      %v865 = vadd.f32 %v656, %v864
      %v866 = vpop.f32.mrb[0].mxu0
      %v867 = vadd.f32 %v656, %v866
      %v868 = vpop.f32.mrb[0].mxu0
      %v869 = vadd.f32 %v661, %v868
      %v870 = vpop.f32.mrb[0].mxu0
      %v871 = vadd.f32 %v661, %v870
      %872 = vmatprep.mubr.bf16.mxu0 %v803
      %873 = vmatmul.mubr.bf16.gmra.mrb[0].mxu0 %v775
      %v874 = vpop.f32.mrb[0].mxu0
      %v875 = vadd.f32 %v666, %v874
      %v876 = vpop.f32.mrb[0].mxu0
      %v877 = vadd.f32 %v666, %v876
      %v878 = vpop.f32.mrb[0].mxu0
      %v879 = vadd.f32 %v671, %v878
      %v880 = vpop.f32.mrb[0].mxu0
      %v881 = vadd.f32 %v671, %v880
      %882 = vmatprep.mubr.bf16.mxu0 %v806
      %883 = vmatmul.mubr.bf16.gmra.mrb[0].mxu0 %v777
      %v884 = vpop.f32.mrb[0].mxu0
      %v885 = vadd.f32 %v676, %v884
      %v886 = vpop.f32.mrb[0].mxu0
      %v887 = vadd.f32 %v676, %v886
      %v888 = vpop.f32.mrb[0].mxu0
      %v889 = vadd.f32 %v681, %v888
      %v890 = vpop.f32.mrb[0].mxu0
      %v891 = vadd.f32 %v681, %v890
      %892 = vmatprep.mubr.bf16.mxu0 %v809
      %893 = vmatmul.mubr.bf16.gmra.mrb[0].mxu0 %v779
      %v894 = vpop.f32.mrb[0].mxu0
      %v895 = vadd.f32 %v686, %v894
      %v896 = vpop.f32.mrb[0].mxu0
      %v897 = vadd.f32 %v686, %v896
      %v898 = vpop.f32.mrb[0].mxu0
      %v899 = vadd.f32 %v691, %v898
      %v900 = vpop.f32.mrb[0].mxu0
      %v901 = vadd.f32 %v691, %v900
      %902 = vmatprep.mubr.bf16.mxu0 %v812
      %903 = vmatmul.mubr.bf16.gmra.mrb[0].mxu0 %v781
      %v904 = vpop.f32.mrb[0].mxu0
      %v905 = vadd.f32 %v696, %v904
      %v906 = vpop.f32.mrb[0].mxu0
      %v907 = vadd.f32 %v696, %v906
      %v908 = vpop.f32.mrb[0].mxu0
      %v909 = vadd.f32 %v701, %v908
      %v910 = vpop.f32.mrb[0].mxu0
      %v911 = vadd.f32 %v701, %v910
      %912 = vmatprep.mubr.bf16.mxu0 %v815
      %913 = vmatmul.mubr.bf16.gmra.mrb[0].mxu0 %v783
      %v914 = vpop.f32.mrb[0].mxu0
      %v915 = vadd.f32 %v706, %v914
      %v916 = vpop.f32.mrb[0].mxu0
      %v917 = vadd.f32 %v706, %v916
      %v918 = vpop.f32.mrb[0].mxu0
      %v919 = vadd.f32 %v711, %v918
      %v920 = vpop.f32.mrb[0].mxu0
      %v921 = vadd.f32 %v711, %v920
      %922 = vmatprep.mubr.bf16.mxu0 %v818
      %923 = vmatmul.mubr.bf16.gmra.mrb[0].mxu0 %v785
      %v924 = vpop.f32.mrb[0].mxu0
      %v925 = vadd.f32 %v716, %v924
      %v926 = vpop.f32.mrb[0].mxu0
      %v927 = vadd.f32 %v716, %v926
      %v928 = vpop.f32.mrb[0].mxu0
      %v929 = vadd.f32 %v721, %v928
      %v930 = vpop.f32.mrb[0].mxu0
      %v931 = vadd.f32 %v721, %v930
      %932 = vdwg.mxu0
      %vm933 = vcmp.gt.f32.partialorder %v855, 0.0
      %vm934 = vcmp.gt.f32.partialorder %v857, 0.0
      %vm935 = vcmp.gt.f32.partialorder %v859, 0.0
      %vm936 = vcmp.gt.f32.partialorder %v861, 0.0
      %vm937 = vcmp.gt.f32.partialorder %v865, 0.0
      %vm938 = vcmp.gt.f32.partialorder %v867, 0.0
      %vm939 = vcmp.gt.f32.partialorder %v869, 0.0
      %vm940 = vcmp.gt.f32.partialorder %v871, 0.0
      %vm941 = vcmp.gt.f32.partialorder %v875, 0.0
      %vm942 = vcmp.gt.f32.partialorder %v877, 0.0
      %vm943 = vcmp.gt.f32.partialorder %v879, 0.0
      %vm944 = vcmp.gt.f32.partialorder %v881, 0.0
      %vm945 = vcmp.gt.f32.partialorder %v885, 0.0
      %vm946 = vcmp.gt.f32.partialorder %v887, 0.0
      %vm947 = vcmp.gt.f32.partialorder %v889, 0.0
      %vm948 = vcmp.gt.f32.partialorder %v891, 0.0
      %vm949 = vcmp.gt.f32.partialorder %v895, 0.0
      %vm950 = vcmp.gt.f32.partialorder %v897, 0.0
      %vm951 = vcmp.gt.f32.partialorder %v899, 0.0
      %vm952 = vcmp.gt.f32.partialorder %v901, 0.0
      %vm953 = vcmp.gt.f32.partialorder %v905, 0.0
      %vm954 = vcmp.gt.f32.partialorder %v907, 0.0
      %vm955 = vcmp.gt.f32.partialorder %v909, 0.0
      %vm956 = vcmp.gt.f32.partialorder %v911, 0.0
      %vm957 = vcmp.gt.f32.partialorder %v915, 0.0
      %vm958 = vcmp.gt.f32.partialorder %v917, 0.0
      %vm959 = vcmp.gt.f32.partialorder %v919, 0.0
      %vm960 = vcmp.gt.f32.partialorder %v921, 0.0
      %vm961 = vcmp.gt.f32.partialorder %v925, 0.0
      %vm962 = vcmp.gt.f32.partialorder %v927, 0.0
      %vm963 = vcmp.gt.f32.partialorder %v929, 0.0
      %vm964 = vcmp.gt.f32.partialorder %v931, 0.0
      %v965 = vmin.f32 %v855, 0.0
      %v966 = vmin.f32 %v857, 0.0
      %v967 = vmin.f32 %v859, 0.0
      %v968 = vmin.f32 %v861, 0.0
      %v969 = vmin.f32 %v865, 0.0
      %v970 = vmin.f32 %v867, 0.0
      %v971 = vmin.f32 %v869, 0.0
      %v972 = vmin.f32 %v871, 0.0
      %v973 = vmin.f32 %v875, 0.0
      %v974 = vmin.f32 %v877, 0.0
      %v975 = vmin.f32 %v879, 0.0
      %v976 = vmin.f32 %v881, 0.0
      %v977 = vmin.f32 %v885, 0.0
      %v978 = vmin.f32 %v887, 0.0
      %v979 = vmin.f32 %v889, 0.0
      %v980 = vmin.f32 %v891, 0.0
      %v981 = vmin.f32 %v895, 0.0
      %v982 = vmin.f32 %v897, 0.0
      %v983 = vmin.f32 %v899, 0.0
      %v984 = vmin.f32 %v901, 0.0
      %v985 = vmin.f32 %v905, 0.0
      %v986 = vmin.f32 %v907, 0.0
      %v987 = vmin.f32 %v909, 0.0
      %v988 = vmin.f32 %v911, 0.0
      %v989 = vmin.f32 %v915, 0.0
      %v990 = vmin.f32 %v917, 0.0
      %v991 = vmin.f32 %v919, 0.0
      %v992 = vmin.f32 %v921, 0.0
      %v993 = vmin.f32 %v925, 0.0
      %v994 = vmin.f32 %v927, 0.0
      %v995 = vmin.f32 %v929, 0.0
      %v996 = vmin.f32 %v931, 0.0
      %v997 = vmul.f32 %v965, 1.442695
      %v998 = vpow.pop %v997
      %v999 = vmul.f32 %v966, 1.442695
      %v1000 = vpow.pop %v999
      %v1001 = vmul.f32 %v967, 1.442695
      %v1002 = vpow.pop %v1001
      %v1003 = vmul.f32 %v968, 1.442695
      %v1004 = vpow.pop %v1003
      %v1005 = vmul.f32 %v969, 1.442695
      %v1006 = vpow.pop %v1005
      %v1007 = vmul.f32 %v970, 1.442695
      %v1008 = vpow.pop %v1007
      %v1009 = vmul.f32 %v971, 1.442695
      %v1010 = vpow.pop %v1009
      %v1011 = vmul.f32 %v972, 1.442695
      %v1012 = vpow.pop %v1011
      %v1013 = vmul.f32 %v973, 1.442695
      %v1014 = vpow.pop %v1013
      %v1015 = vmul.f32 %v974, 1.442695
      %v1016 = vpow.pop %v1015
      %v1017 = vmul.f32 %v975, 1.442695
      %v1018 = vpow.pop %v1017
      %v1019 = vmul.f32 %v976, 1.442695
      %v1020 = vpow.pop %v1019
      %v1021 = vmul.f32 %v977, 1.442695
      %v1022 = vpow.pop %v1021
      %v1023 = vmul.f32 %v978, 1.442695
      %v1024 = vpow.pop %v1023
      %v1025 = vmul.f32 %v979, 1.442695
      %v1026 = vpow.pop %v1025
      %v1027 = vmul.f32 %v980, 1.442695
      %v1028 = vpow.pop %v1027
      %v1029 = vmul.f32 %v981, 1.442695
      %v1030 = vpow.pop %v1029
      %v1031 = vmul.f32 %v982, 1.442695
      %v1032 = vpow.pop %v1031
      %v1033 = vmul.f32 %v983, 1.442695
      %v1034 = vpow.pop %v1033
      %v1035 = vmul.f32 %v984, 1.442695
      %v1036 = vpow.pop %v1035
      %v1037 = vmul.f32 %v985, 1.442695
      %v1038 = vpow.pop %v1037
      %v1039 = vmul.f32 %v986, 1.442695
      %v1040 = vpow.pop %v1039
      %v1041 = vmul.f32 %v987, 1.442695
      %v1042 = vpow.pop %v1041
      %v1043 = vmul.f32 %v988, 1.442695
      %v1044 = vpow.pop %v1043
      %v1045 = vmul.f32 %v989, 1.442695
      %v1046 = vpow.pop %v1045
      %v1047 = vmul.f32 %v990, 1.442695
      %v1048 = vpow.pop %v1047
      %v1049 = vmul.f32 %v991, 1.442695
      %v1050 = vpow.pop %v1049
      %v1051 = vmul.f32 %v992, 1.442695
      %v1052 = vpow.pop %v1051
      %v1053 = vmul.f32 %v993, 1.442695
      %v1054 = vpow.pop %v1053
      %v1055 = vmul.f32 %v994, 1.442695
      %v1056 = vpow.pop %v1055
      %v1057 = vmul.f32 %v995, 1.442695
      %v1058 = vpow.pop %v1057
      %v1059 = vmul.f32 %v996, 1.442695
      %v1060 = vpow.pop %v1059
      %v1061 = vsub.f32 %v998, 1.0
      %v1062 = vsub.f32 %v1000, 1.0
      %v1063 = vsub.f32 %v1002, 1.0
      %v1064 = vsub.f32 %v1004, 1.0
      %v1065 = vsub.f32 %v1006, 1.0
      %v1066 = vsub.f32 %v1008, 1.0
      %v1067 = vsub.f32 %v1010, 1.0
      %v1068 = vsub.f32 %v1012, 1.0
      %v1069 = vsub.f32 %v1014, 1.0
      %v1070 = vsub.f32 %v1016, 1.0
      %v1071 = vsub.f32 %v1018, 1.0
      %v1072 = vsub.f32 %v1020, 1.0
      %v1073 = vsub.f32 %v1022, 1.0
      %v1074 = vsub.f32 %v1024, 1.0
      %v1075 = vsub.f32 %v1026, 1.0
      %v1076 = vsub.f32 %v1028, 1.0
      %v1077 = vsub.f32 %v1030, 1.0
      %v1078 = vsub.f32 %v1032, 1.0
      %v1079 = vsub.f32 %v1034, 1.0
      %v1080 = vsub.f32 %v1036, 1.0
      %v1081 = vsub.f32 %v1038, 1.0
      %v1082 = vsub.f32 %v1040, 1.0
      %v1083 = vsub.f32 %v1042, 1.0
      %v1084 = vsub.f32 %v1044, 1.0
      %v1085 = vsub.f32 %v1046, 1.0
      %v1086 = vsub.f32 %v1048, 1.0
      %v1087 = vsub.f32 %v1050, 1.0
      %v1088 = vsub.f32 %v1052, 1.0
      %v1089 = vsub.f32 %v1054, 1.0
      %v1090 = vsub.f32 %v1056, 1.0
      %v1091 = vsub.f32 %v1058, 1.0
      %v1092 = vsub.f32 %v1060, 1.0
      %v1093 = vsel %vm933, %v855, %v1061
      %v1094 = vsel %vm934, %v857, %v1062
      %v1095 = vsel %vm935, %v859, %v1063
      %v1096 = vsel %vm936, %v861, %v1064
      %v1097 = vsel %vm937, %v865, %v1065
      %v1098 = vsel %vm938, %v867, %v1066
      %v1099 = vsel %vm939, %v869, %v1067
      %v1100 = vsel %vm940, %v871, %v1068
      %v1101 = vsel %vm941, %v875, %v1069
      %v1102 = vsel %vm942, %v877, %v1070
      %v1103 = vsel %vm943, %v879, %v1071
      %v1104 = vsel %vm944, %v881, %v1072
      %v1105 = vsel %vm945, %v885, %v1073
      %v1106 = vsel %vm946, %v887, %v1074
      %v1107 = vsel %vm947, %v889, %v1075
      %v1108 = vsel %vm948, %v891, %v1076
      %v1109 = vsel %vm949, %v895, %v1077
      %v1110 = vsel %vm950, %v897, %v1078
      %v1111 = vsel %vm951, %v899, %v1079
      %v1112 = vsel %vm952, %v901, %v1080
      %v1113 = vsel %vm953, %v905, %v1081
      %v1114 = vsel %vm954, %v907, %v1082
      %v1115 = vsel %vm955, %v909, %v1083
      %v1116 = vsel %vm956, %v911, %v1084
      %v1117 = vsel %vm957, %v915, %v1085
      %v1118 = vsel %vm958, %v917, %v1086
      %v1119 = vsel %vm959, %v919, %v1087
      %v1120 = vsel %vm960, %v921, %v1088
      %v1121 = vsel %vm961, %v925, %v1089
      %v1122 = vsel %vm962, %v927, %v1090
      %v1123 = vsel %vm963, %v929, %v1091
      %v1124 = vsel %vm964, %v931, %v1092
      %1125 = vst [vmem:[%s224] sm:$0xff] %v1093
      %1126 = vst [vmem:[%s224 + $0x8] sm:$0xff] %v1094
      %1127 = vst [vmem:[%s224 + $0x10] sm:$0xff] %v1095
      %1128 = vst [vmem:[%s224 + $0x18] sm:$0xff] %v1096
      %1129 = vst [vmem:[%s224 + $0x20] sm:$0xff] %v1097
      %1130 = vst [vmem:[%s224 + $0x28] sm:$0xff] %v1098
      %1131 = vst [vmem:[%s224 + $0x30] sm:$0xff] %v1099
      %1132 = vst [vmem:[%s224 + $0x38] sm:$0xff] %v1100
      %1133 = vst [vmem:[%s224 + $0x40] sm:$0xff] %v1101
      %1134 = vst [vmem:[%s224 + $0x48] sm:$0xff] %v1102
      %1135 = vst [vmem:[%s224 + $0x50] sm:$0xff] %v1103
      %1136 = vst [vmem:[%s224 + $0x58] sm:$0xff] %v1104
      %1137 = vst [vmem:[%s224 + $0x60] sm:$0xff] %v1105
      %1138 = vst [vmem:[%s224 + $0x68] sm:$0xff] %v1106
      %1139 = vst [vmem:[%s224 + $0x70] sm:$0xff] %v1107
      %1140 = vst [vmem:[%s224 + $0x78] sm:$0xff] %v1108
      %1141 = vst [vmem:[%s224 + $0x80] sm:$0xff] %v1109
      %1142 = vst [vmem:[%s224 + $0x88] sm:$0xff] %v1110
      %1143 = vst [vmem:[%s224 + $0x90] sm:$0xff] %v1111
      %1144 = vst [vmem:[%s224 + $0x98] sm:$0xff] %v1112
      %1145 = vst [vmem:[%s224 + $0xa0] sm:$0xff] %v1113
      %1146 = vst [vmem:[%s224 + $0xa8] sm:$0xff] %v1114
      %1147 = vst [vmem:[%s224 + $0xb0] sm:$0xff] %v1115
      %1148 = vst [vmem:[%s224 + $0xb8] sm:$0xff] %v1116
      %1149 = vst [vmem:[%s224 + $0xc0] sm:$0xff] %v1117
      %1150 = vst [vmem:[%s224 + $0xc8] sm:$0xff] %v1118
      %1151 = vst [vmem:[%s224 + $0xd0] sm:$0xff] %v1119
      %1152 = vst [vmem:[%s224 + $0xd8] sm:$0xff] %v1120
      %1153 = vst [vmem:[%s224 + $0xe0] sm:$0xff] %v1121
      %1154 = vst [vmem:[%s224 + $0xe8] sm:$0xff] %v1122
      %1155 = vst [vmem:[%s224 + $0xf0] sm:$0xff] %v1123
      %1156 = vst [vmem:[%s224 + $0xf8] sm:$0xff] %v1124
      %p1157 = scmp.lt.s32.totalorder %s16, 1
      %s1158 = scalar_select %p1157, %s16, 1
      %s1159 = smul.addr %s1158, 32
      %s1160 = smul.addr %s1159, 8
      %s1161 = scalar_lea.vmem %s5, %s1160
      // Predicated region
      $region41: #{fire_forward.1} parent=39 // pred_check
        %p1162 = pneg %p144
      $region42: #{fire_forward.1} parent=39 // pred_check_branch
        %1164 = sbr.rel (%p1162) target = $region44
      $region43: #{fire_forward.1} parent=39 // pred_region
        _
      $region44: #{fire_forward.1} parent=39 // pred_fallthru
        _
    $region40: #{fire_forward.1} parent=5 // pred_fallthru
      _
    %p1165 = scmp.le.s32.totalorder 2, %s11
    // Predicated region
    $region45: #{fire_forward.1} parent=5 // pred_check
      %p1166 = pneg %p1165
    $region46: #{fire_forward.1} parent=5 // pred_check_branch
      %1168 = sbr.rel (%p1166) target = $region48
    $region47: #{fire_forward.1} parent=5 // pred_region
      %s1169 = ssub.s32 %s11, 2
      // Predicated region
      $region49: #{fire_forward.1} parent=47 // pred_check
        %p1170 = pneg %p150
      $region50: #{fire_forward.1} parent=47 // pred_check_branch
        %1172 = sbr.rel (%p1170) target = $region52
      $region51: #{fire_forward.1} parent=47 // pred_region
        %p1173 = scmp.lt.s32.totalorder %s17, 1
        %s1174 = scalar_select %p1173, %s17, 1
        %s1175 = smul.addr %s1174, 32
        %s1176 = smul.addr %s1175, 8
        %s1177 = scalar_lea.vmem %s5, %s1176
      $region52: #{fire_forward.1} parent=47 // pred_fallthru
        _
    $region48: #{fire_forward.1} parent=5 // pred_fallthru
      _
  $region6: #{fire_forward.1} parent=0 // loop_footer
    %s15 = sadd.s32 1, %s11
  $region7: #{fire_forward.1} parent=0 // loop_footer_branch
    %10 = sbr.rel target = $region3
  $region8: #{fire_forward.1} parent=0 // loop_exit
    _

</llo_original>
